<compile_context>
chip_gen: v7x
topology: tpu7x:2x2x1
jax: 0.10.0
libtpu: 0.0.40
codegen_flags: <defaults>
</compile_context>

<pallas_src>
import jax
import jax.numpy as jnp
from jax.experimental import pallas as pl
from jax.experimental.pallas import tpu as pltpu

NUM_INPUT_FEATURES = 471
HIDDEN = 500
NUM_CLASSES = 2

# (8, 128)-aligned padded sizes for the hidden / class dims (lane-dense blocks).
H_PAD = 512
C_PAD = 128

TILE_B_TARGET = 512  # ~1 MiB of f32 x per tile; small double-buffered tiles on every gen


def _round_up(n, m):
    return ((n + m - 1) // m) * m


def _choose_tile_b(batch):
    # Hug B (at most 8 * n_tiles wasted rows) and keep >= 2 grid steps whenever there
    # is enough work, so v7x's two TensorCores and the DMA pipeline both engage.
    n_tiles = max(1, -(-batch // TILE_B_TARGET))
    if batch >= 16:
        n_tiles = max(n_tiles, 2)
    return _round_up(-(-batch // n_tiles), 8)


def feedforward_kernel(x_ref, w1_ref, b1_ref, w2_ref, b2_ref, out_ref):
    # fc1: cast the streamed f32 rows to bf16 in VMEM (cheap VPU work hidden under the
    # MXU). The K=471 contraction is masked internally by Mosaic -> exact math.
    x = x_ref[...].astype(jnp.bfloat16)                                    # [tB, 471] bf16
    h = jnp.dot(x, w1_ref[...], preferred_element_type=jnp.float32)        # [tB, 512] f32
    h = jnp.maximum(h + b1_ref[...], 0.0)                                  # bias + ReLU (f32, VPU)
    # linear: Linear(500 -> 2), padded to 128 output lanes -> unmasked lane-dense store.
    o = jnp.dot(h.astype(jnp.bfloat16), w2_ref[...],
                preferred_element_type=jnp.float32)                        # [tB, 128] f32
    out_ref[...] = (o + b2_ref[...]).astype(out_ref.dtype)                 # bf16 store (half bytes)


def prepare_params(w1t, b1, w2t, b2):
    """One-time pad + bf16 cast of the static parameters (call once, reuse every step)."""
    w1_p = jnp.zeros((NUM_INPUT_FEATURES, H_PAD), jnp.bfloat16).at[:, :HIDDEN].set(
        w1t.astype(jnp.bfloat16))
    b1_p = jnp.zeros((1, H_PAD), jnp.float32).at[0, :HIDDEN].set(
        b1.reshape(-1).astype(jnp.float32))
    w2_p = jnp.zeros((H_PAD, C_PAD), jnp.bfloat16).at[:HIDDEN, :NUM_CLASSES].set(
        w2t.astype(jnp.bfloat16))
    b2_p = jnp.zeros((1, C_PAD), jnp.float32).at[0, :NUM_CLASSES].set(
        b2.reshape(-1).astype(jnp.float32))
    return w1_p, b1_p, w2_p, b2_p


@jax.jit
def feedforward(x, w1_p, b1_p, w2_p, b2_p):
    """x: [B, 471] f32 (or bf16); pre-padded params from prepare_params() -> [B, 2] f32."""
    B = x.shape[0]
    tile_b = _choose_tile_b(B)
    grid_b = -(-B // tile_b)   # Pallas masks the partial final batch block for us

    out_padded = pl.pallas_call(
        feedforward_kernel,
        out_shape=jax.ShapeDtypeStruct((B, C_PAD), jnp.bfloat16),
        grid=(grid_b,),
        in_specs=[
            pl.BlockSpec((tile_b, NUM_INPUT_FEATURES), lambda i: (i, 0)),  # x streams by batch tile
            pl.BlockSpec((NUM_INPUT_FEATURES, H_PAD), lambda i: (0, 0)),   # weights stay VMEM-resident
            pl.BlockSpec((1, H_PAD), lambda i: (0, 0)),
            pl.BlockSpec((H_PAD, C_PAD), lambda i: (0, 0)),
            pl.BlockSpec((1, C_PAD), lambda i: (0, 0)),
        ],
        out_specs=pl.BlockSpec((tile_b, C_PAD), lambda i: (i, 0)),          # lane-dense output block
        compiler_params=pltpu.CompilerParams(
            dimension_semantics=("parallel",)),  # batch tiles shard across v7x's 2 TCs
    )(x, w1_p, b1_p, w2_p, b2_p)

    # Lane slice + cast back to f32 logits ([B, 2] only - negligible work).
    return out_padded[:, :NUM_CLASSES].astype(jnp.float32)


def init_params(key):
    """Deterministic init mirroring PyTorch nn.Linear default (uniform +-1/sqrt(fan_in)).

    Stored transposed ([in, out]) for the kernel's x @ W layout, in f32.
    """
    k1, k2, k3, k4 = jax.random.split(key, 4)
    bound1 = 1.0 / jnp.sqrt(NUM_INPUT_FEATURES)
    bound2 = 1.0 / jnp.sqrt(HIDDEN)
    w1t = jax.random.uniform(k1, (NUM_INPUT_FEATURES, HIDDEN), jnp.float32, -bound1, bound1)
    b1 = jax.random.uniform(k2, (HIDDEN,), jnp.float32, -bound1, bound1)
    w2t = jax.random.uniform(k3, (HIDDEN, NUM_CLASSES), jnp.float32, -bound2, bound2)
    b2 = jax.random.uniform(k4, (NUM_CLASSES,), jnp.float32, -bound2, bound2)
    return w1t, b1, w2t, b2


if __name__ == "__main__":
    key = jax.random.PRNGKey(0)
    kx, kp = jax.random.split(key)
    B = 8
    x = jax.random.normal(kx, (B, NUM_INPUT_FEATURES), jnp.float32)
    w1t, b1, w2t, b2 = init_params(kp)

    # One-time parameter padding/cast (not part of the per-call path).
    params = prepare_params(w1t, b1, w2t, b2)

    out = feedforward(x, *params)
    out = jax.block_until_ready(out)
    assert out.shape == (B, NUM_CLASSES)

    # Reference with the same numerics pipeline (bf16 matmul operands, f32 accumulation,
    # bf16 final store) - should match the kernel tightly.
    ref_h = jnp.dot(x.astype(jnp.bfloat16), w1t.astype(jnp.bfloat16),
                    preferred_element_type=jnp.float32) + b1
    ref_h = jnp.maximum(ref_h, 0.0)
    ref = jnp.dot(ref_h.astype(jnp.bfloat16), w2t.astype(jnp.bfloat16),
                  preferred_element_type=jnp.float32) + b2
    ref = ref.astype(jnp.bfloat16).astype(jnp.float32)
    assert jnp.allclose(out, ref, atol=2e-2, rtol=2e-2), \
        f"max abs err {jnp.max(jnp.abs(out - ref))}"

    # Loose sanity check against the full-f32 reference (bf16 rounding only).
    ref_f32 = jnp.maximum(x @ w1t + b1, 0.0) @ w2t + b2
    assert jnp.allclose(out, ref_f32, atol=5e-2, rtol=5e-2), \
        f"max abs err vs f32 {jnp.max(jnp.abs(out - ref_f32))}"

    print("KERNEL_OK")
</pallas_src>

<mosaic_0001>
module attributes {stable_mosaic.version = 11 : i64} {
  func.func @feedforward_kernel(%arg0: i32, %arg1: memref<8x471xf32, #tpu.memory_space<vmem>>, %arg2: memref<471x512xbf16, #tpu.memory_space<vmem>>, %arg3: memref<1x512xf32, #tpu.memory_space<vmem>>, %arg4: memref<512x128xbf16, #tpu.memory_space<vmem>>, %arg5: memref<1x128xf32, #tpu.memory_space<vmem>>, %arg6: memref<8x128xbf16, #tpu.memory_space<vmem>>) attributes {dimension_semantics = [#tpu.dimension_semantics<parallel>], iteration_bounds = array<i64: 1>, scalar_prefetch = 0 : i64, scratch_operands = 0 : i64, tpu.core_type = #tpu.core_type<tc>, window_params = [{transform_indices = @transform_0, window_bounds = array<i64: 8, 471>}, {pipeline_mode = #tpu.pipeline_mode<synchronous>, transform_indices = @transform_1, window_bounds = array<i64: 471, 512>}, {pipeline_mode = #tpu.pipeline_mode<synchronous>, transform_indices = @transform_2, window_bounds = array<i64: 1, 512>}, {pipeline_mode = #tpu.pipeline_mode<synchronous>, transform_indices = @transform_3, window_bounds = array<i64: 512, 128>}, {pipeline_mode = #tpu.pipeline_mode<synchronous>, transform_indices = @transform_4, window_bounds = array<i64: 1, 128>}, {transform_indices = @transform_5, window_bounds = array<i64: 8, 128>}]} {
    %c0 = arith.constant 0 : index
    %c0_0 = arith.constant 0 : index
    %0 = vector.load %arg1[%c0, %c0_0] : memref<8x471xf32, #tpu.memory_space<vmem>>, vector<8x471xf32>
    %1 = arith.truncf %0 : vector<8x471xf32> to vector<8x471xbf16>
    %c0_1 = arith.constant 0 : index
    %c0_2 = arith.constant 0 : index
    %2 = vector.load %arg2[%c0_1, %c0_2] : memref<471x512xbf16, #tpu.memory_space<vmem>>, vector<471x512xbf16>
    %cst = arith.constant dense<0.000000e+00> : vector<8x512xf32>
    %3 = tpu.matmul %1, %2, %cst {dimension_numbers = #tpu.dot_dimension_numbers<[1], [0], [0], [1], [0, 0, 1, 1], [], []>} : vector<8x471xbf16>, vector<471x512xbf16>, vector<8x512xf32> -> vector<8x512xf32>
    %c0_3 = arith.constant 0 : index
    %c0_4 = arith.constant 0 : index
    %4 = vector.load %arg3[%c0_3, %c0_4] : memref<1x512xf32, #tpu.memory_space<vmem>>, vector<1x512xf32>
    %5 = vector.broadcast %4 : vector<1x512xf32> to vector<8x512xf32>
    %6 = arith.addf %3, %5 : vector<8x512xf32>
    %cst_5 = arith.constant 0.000000e+00 : f32
    %7 = vector.broadcast %cst_5 : f32 to vector<8x512xf32>
    %8 = arith.maximumf %6, %7 : vector<8x512xf32>
    %9 = arith.truncf %8 : vector<8x512xf32> to vector<8x512xbf16>
    %c0_6 = arith.constant 0 : index
    %c0_7 = arith.constant 0 : index
    %10 = vector.load %arg4[%c0_6, %c0_7] : memref<512x128xbf16, #tpu.memory_space<vmem>>, vector<512x128xbf16>
    %cst_8 = arith.constant dense<0.000000e+00> : vector<8x128xf32>
    %11 = tpu.matmul %9, %10, %cst_8 {dimension_numbers = #tpu.dot_dimension_numbers<[1], [0], [0], [1], [0, 0, 1, 1], [], []>} : vector<8x512xbf16>, vector<512x128xbf16>, vector<8x128xf32> -> vector<8x128xf32>
    %c0_9 = arith.constant 0 : index
    %c0_10 = arith.constant 0 : index
    %12 = vector.load %arg5[%c0_9, %c0_10] : memref<1x128xf32, #tpu.memory_space<vmem>>, vector<1x128xf32>
    %13 = vector.broadcast %12 : vector<1x128xf32> to vector<8x128xf32>
    %14 = arith.addf %11, %13 : vector<8x128xf32>
    %15 = arith.truncf %14 : vector<8x128xf32> to vector<8x128xbf16>
    %c0_11 = arith.constant 0 : index
    %c0_12 = arith.constant 0 : index
    %16 = vector.load %arg6[%c0_11, %c0_12] : memref<8x128xbf16, #tpu.memory_space<vmem>>, vector<8x128xbf16>
    tpu.vector_store %arg6[%c0_11, %c0_12], %15 {strides = array<i32>} : memref<8x128xbf16, #tpu.memory_space<vmem>>, vector<8x128xbf16>,
    return
  }
  func.func @transform_0(%arg0: i32) -> (i32, i32) {
    %c0_i32 = arith.constant 0 : i32
    %c0_i32_0 = arith.constant 0 : i32
    return %arg0, %c0_i32 : i32, i32
  }
  func.func @transform_1(%arg0: i32) -> (i32, i32) {
    %c0_i32 = arith.constant 0 : i32
    %c0_i32_0 = arith.constant 0 : i32
    %c0_i32_1 = arith.constant 0 : i32
    return %c0_i32, %c0_i32_0 : i32, i32
  }
  func.func @transform_2(%arg0: i32) -> (i32, i32) {
    %c0_i32 = arith.constant 0 : i32
    %c0_i32_0 = arith.constant 0 : i32
    %c0_i32_1 = arith.constant 0 : i32
    return %c0_i32, %c0_i32_0 : i32, i32
  }
  func.func @transform_3(%arg0: i32) -> (i32, i32) {
    %c0_i32 = arith.constant 0 : i32
    %c0_i32_0 = arith.constant 0 : i32
    %c0_i32_1 = arith.constant 0 : i32
    return %c0_i32, %c0_i32_0 : i32, i32
  }
  func.func @transform_4(%arg0: i32) -> (i32, i32) {
    %c0_i32 = arith.constant 0 : i32
    %c0_i32_0 = arith.constant 0 : i32
    %c0_i32_1 = arith.constant 0 : i32
    return %c0_i32, %c0_i32_0 : i32, i32
  }
  func.func @transform_5(%arg0: i32) -> (i32, i32) {
    %c0_i32 = arith.constant 0 : i32
    %c0_i32_0 = arith.constant 0 : i32
    return %arg0, %c0_i32 : i32, i32
  }
}

</mosaic_0001>

<llo_original>
// kernel: feedforward.1
$region0: #{feedforward.1}
  #allocation0 [shape = 'u32[]', space=smem, size = 0x4, offset = 0x4, fixed_abs, tag = 'smem constant byte address 0x4 - core index']
  #allocation1 [shape = 'u32[144,128]{1,0:T(1,128)}', space=vmem, size = 0x12000, scoped, tag = 'internal scratch']
  %s0 = inlined_call_operand.hbm [shape: f32[8,471], index: 0, kind: input, shape index: {}]
  %s1 = inlined_call_operand.hbm [shape: bf16[471,512], index: 1, kind: input, shape index: {}]
  %s2 = inlined_call_operand.vmem [shape: f32[1,512], index: 2, kind: input, shape index: {}]
  %s3 = inlined_call_operand.hbm [shape: bf16[512,128], index: 3, kind: input, shape index: {}]
  %s4 = inlined_call_operand.vmem [shape: f32[1,128], index: 4, kind: input, shape index: {}]
  %s5 = inlined_call_operand.vmem [shape: bf16[8,128], index: 5, kind: output, shape index: {}]
  %s6 = sld [smem:[#allocation0]]
  $region42: #{feedforward.1} parent=0
    _
  %s8 = ssub.s32 1, %s6
  %s9 = scalar_select 0, %s8, %s6
  $region1: #{feedforward.1} parent=0
    #allocation2 [shape = 'u8[16384]{0}', space=vmem, size = 0x4000, scoped, tag = 'input window, operand 0, single buffered']
    #allocation3 [shape = 's32[1]{0}', space=sflag, size = 0x4, scoped, tag = 'scoped memory for feedforward.1']
    #allocation4 [shape = 'u8[483328]{0}', space=vmem, size = 0x76000, scoped, tag = 'input window, operand 1, single buffered']
    #allocation5 [shape = 's32[1]{0}', space=sflag, size = 0x4, scoped, tag = 'scoped memory for feedforward.1']
    #allocation6 [shape = 'u8[131072]{0}', space=vmem, size = 0x20000, scoped, tag = 'input window, operand 3, single buffered']
    %10 = vsyncpa [#allocation3], 0
    %11 = vsyncpa [#allocation5], 0
    // Predicated region
    $region2: #{feedforward.1} parent=1 // pred_check
      _
    $region3: #{feedforward.1} parent=1 // pred_check_branch
      %13 = sbr.rel (0) target = $region5
    $region4: #{feedforward.1} parent=1 // pred_region
      %s15 = ssub.s32 512, 512
      %16 = vsyncadd [#allocation3], %s15
      %s18 = sshll.u32 [#allocation2], 4
      %s19 = int_to_ptr.vmem [resolvable:$true] %s18
      %21 = dma.hbm_to_vmem [thread:$0]  %s0, 512, %s19, [#allocation3]
    $region5: #{feedforward.1} parent=1 // pred_fallthru
      _
    // Predicated region
    $region6: #{feedforward.1} parent=1 // pred_check
      _
    $region7: #{feedforward.1} parent=1 // pred_check_branch
      %23 = sbr.rel (0) target = $region9
    $region8: #{feedforward.1} parent=1 // pred_region
      %s25 = ssub.s32 15104, 15104
      %26 = vsyncadd [#allocation5], %s25
      %s27 = sshll.u32 [#allocation4], 4
      %s28 = int_to_ptr.vmem [resolvable:$true] %s27
      %33 = dma.hbm_to_vmem [thread:$0]  %s1, 15104, %s28, [#allocation5], 256, 256, 16
    $region9: #{feedforward.1} parent=1 // pred_fallthru
      _
    // Predicated region
    $region10: #{feedforward.1} parent=1 // pred_check
      _
    $region11: #{feedforward.1} parent=1 // pred_check_branch
      %35 = sbr.rel (0) target = $region13
    $region12: #{feedforward.1} parent=1 // pred_region
      _
    $region13: #{feedforward.1} parent=1 // pred_fallthru
      _
    // Predicated region
    $region14: #{feedforward.1} parent=1 // pred_check
      _
    $region15: #{feedforward.1} parent=1 // pred_check_branch
      %37 = sbr.rel (0) target = $region17
    $region16: #{feedforward.1} parent=1 // pred_region
      %s39 = ssub.s32 4096, 4096
      %40 = vsyncadd [#allocation5], %s39
      %s41 = sshll.u32 [#allocation6], 4
      %s42 = int_to_ptr.vmem [resolvable:$true] %s41
      %47 = dma.hbm_to_vmem [thread:$0]  %s3, 4096, %s42, [#allocation5], 64, 64, 4
    $region17: #{feedforward.1} parent=1 // pred_fallthru
      _
    // Predicated region
    $region18: #{feedforward.1} parent=1 // pred_check
      _
    $region19: #{feedforward.1} parent=1 // pred_check_branch
      %49 = sbr.rel (0) target = $region21
    $region20: #{feedforward.1} parent=1 // pred_region
      _
    $region21: #{feedforward.1} parent=1 // pred_fallthru
      _
    // Predicated region
    $region22: #{feedforward.1} parent=1 // pred_check
      _
    $region23: #{feedforward.1} parent=1 // pred_check_branch
      %51 = sbr.rel (0) target = $region25
    $region24: #{feedforward.1} parent=1 // pred_region
      %52 = dma.done [#allocation3], 512
    $region25: #{feedforward.1} parent=1 // pred_fallthru
      _
    // Predicated region
    $region26: #{feedforward.1} parent=1 // pred_check
      _
    $region27: #{feedforward.1} parent=1 // pred_check_branch
      %54 = sbr.rel (0) target = $region29
    $region28: #{feedforward.1} parent=1 // pred_region
      %55 = dma.done [#allocation5], 15104
    $region29: #{feedforward.1} parent=1 // pred_fallthru
      _
    // Predicated region
    $region30: #{feedforward.1} parent=1 // pred_check
      _
    $region31: #{feedforward.1} parent=1 // pred_check_branch
      %57 = sbr.rel (0) target = $region33
    $region32: #{feedforward.1} parent=1 // pred_region
      %58 = dma.done [#allocation5], 4096
    $region33: #{feedforward.1} parent=1 // pred_fallthru
      _
    %v60 = vld [vmem:[#allocation2] sm:$0xff]
    %v61 = vld [vmem:[#allocation2 + $0x8] sm:$0xff]
    %v62 = vld [vmem:[#allocation2 + $0x10] sm:$0xff]
    %v63 = vld [vmem:[#allocation2 + $0x18] sm:$0xff]
    %v64 = vpack.c.bf16 %v60, %v60
    %v65 = vpack.c.bf16 %v61, %v61
    %v66 = vpack.c.bf16 %v62, %v62
    %v67 = vpack.c.bf16 %v63, %v63
    %v68 = vld [vmem:[#allocation4] sm:$0xff]
    %v69 = vld [vmem:[#allocation4 + $0x8] sm:$0xff]
    %v70 = vld [vmem:[#allocation4 + $0x10] sm:$0xff]
    %v71 = vld [vmem:[#allocation4 + $0x18] sm:$0xff]
    %v72 = vld [vmem:[#allocation4 + $0x20] sm:$0xff]
    %v73 = vld [vmem:[#allocation4 + $0x28] sm:$0xff]
    %v74 = vld [vmem:[#allocation4 + $0x30] sm:$0xff]
    %v75 = vld [vmem:[#allocation4 + $0x38] sm:$0xff]
    %v76 = vld [vmem:[#allocation4 + $0x40] sm:$0xff]
    %v77 = vld [vmem:[#allocation4 + $0x48] sm:$0xff]
    %v78 = vld [vmem:[#allocation4 + $0x50] sm:$0xff]
    %v79 = vld [vmem:[#allocation4 + $0x58] sm:$0xff]
    %v80 = vld [vmem:[#allocation4 + $0x60] sm:$0xff]
    %v81 = vld [vmem:[#allocation4 + $0x68] sm:$0xff]
    %v82 = vld [vmem:[#allocation4 + $0x70] sm:$0xff]
    %v83 = vld [vmem:[#allocation4 + $0x78] sm:$0xff]
    %v84 = vld [vmem:[#allocation4 + $0x80] sm:$0xff]
    %v85 = vld [vmem:[#allocation4 + $0x88] sm:$0xff]
    %v86 = vld [vmem:[#allocation4 + $0x90] sm:$0xff]
    %v87 = vld [vmem:[#allocation4 + $0x98] sm:$0xff]
    %v88 = vld [vmem:[#allocation4 + $0xa0] sm:$0xff]
    %v89 = vld [vmem:[#allocation4 + $0xa8] sm:$0xff]
    %v90 = vld [vmem:[#allocation4 + $0xb0] sm:$0xff]
    %v91 = vld [vmem:[#allocation4 + $0xb8] sm:$0xff]
    %v92 = vld [vmem:[#allocation4 + $0xc0] sm:$0xff]
    %v93 = vld [vmem:[#allocation4 + $0xc8] sm:$0xff]
    %v94 = vld [vmem:[#allocation4 + $0xd0] sm:$0xff]
    %v95 = vld [vmem:[#allocation4 + $0xd8] sm:$0xff]
    %v96 = vld [vmem:[#allocation4 + $0xe0] sm:$0xff]
    %v97 = vld [vmem:[#allocation4 + $0xe8] sm:$0xff]
    %v98 = vld [vmem:[#allocation4 + $0xf0] sm:$0xff]
    %v99 = vld [vmem:[#allocation4 + $0xf8] sm:$0xff]
    %v100 = vld [vmem:[#allocation4 + $0x100] sm:$0xff]
    %v101 = vld [vmem:[#allocation4 + $0x108] sm:$0xff]
    %v102 = vld [vmem:[#allocation4 + $0x110] sm:$0xff]
    %v103 = vld [vmem:[#allocation4 + $0x118] sm:$0xff]
    %v104 = vld [vmem:[#allocation4 + $0x120] sm:$0xff]
    %v105 = vld [vmem:[#allocation4 + $0x128] sm:$0xff]
    %v106 = vld [vmem:[#allocation4 + $0x130] sm:$0xff]
    %v107 = vld [vmem:[#allocation4 + $0x138] sm:$0xff]
    %v108 = vld [vmem:[#allocation4 + $0x140] sm:$0xff]
    %v109 = vld [vmem:[#allocation4 + $0x148] sm:$0xff]
    %v110 = vld [vmem:[#allocation4 + $0x150] sm:$0xff]
    %v111 = vld [vmem:[#allocation4 + $0x158] sm:$0xff]
    %v112 = vld [vmem:[#allocation4 + $0x160] sm:$0xff]
    %v113 = vld [vmem:[#allocation4 + $0x168] sm:$0xff]
    %v114 = vld [vmem:[#allocation4 + $0x170] sm:$0xff]
    %v115 = vld [vmem:[#allocation4 + $0x178] sm:$0xff]
    %v116 = vld [vmem:[#allocation4 + $0x180] sm:$0xff]
    %v117 = vld [vmem:[#allocation4 + $0x188] sm:$0xff]
    %v118 = vld [vmem:[#allocation4 + $0x190] sm:$0xff]
    %v119 = vld [vmem:[#allocation4 + $0x198] sm:$0xff]
    %v120 = vld [vmem:[#allocation4 + $0x1a0] sm:$0xff]
    %v121 = vld [vmem:[#allocation4 + $0x1a8] sm:$0xff]
    %v122 = vld [vmem:[#allocation4 + $0x1b0] sm:$0xff]
    %v123 = vld [vmem:[#allocation4 + $0x1b8] sm:$0xff]
    %v124 = vld [vmem:[#allocation4 + $0x1c0] sm:$0xff]
    %v125 = vld [vmem:[#allocation4 + $0x1c8] sm:$0xff]
    %v126 = vld [vmem:[#allocation4 + $0x1d0] sm:$0xff]
    %v127 = vld [vmem:[#allocation4 + $0x1d8] sm:$0xff]
    %v128 = vld [vmem:[#allocation4 + $0x1e0] sm:$0xff]
    %v129 = vld [vmem:[#allocation4 + $0x1e8] sm:$0xff]
    %v130 = vld [vmem:[#allocation4 + $0x1f0] sm:$0xff]
    %v131 = vld [vmem:[#allocation4 + $0x1f8] sm:$0xff]
    %v132 = vld [vmem:[#allocation4 + $0x200] sm:$0xff]
    %v133 = vld [vmem:[#allocation4 + $0x208] sm:$0xff]
    %v134 = vld [vmem:[#allocation4 + $0x210] sm:$0xff]
    %v135 = vld [vmem:[#allocation4 + $0x218] sm:$0xff]
    %v136 = vld [vmem:[#allocation4 + $0x220] sm:$0xff]
    %v137 = vld [vmem:[#allocation4 + $0x228] sm:$0xff]
    %v138 = vld [vmem:[#allocation4 + $0x230] sm:$0xff]
    %v139 = vld [vmem:[#allocation4 + $0x238] sm:$0xff]
    %v140 = vld [vmem:[#allocation4 + $0x240] sm:$0xff]
    %v141 = vld [vmem:[#allocation4 + $0x248] sm:$0xff]
    %v142 = vld [vmem:[#allocation4 + $0x250] sm:$0xff]
    %v143 = vld [vmem:[#allocation4 + $0x258] sm:$0xff]
    %v144 = vld [vmem:[#allocation4 + $0x260] sm:$0xff]
    %v145 = vld [vmem:[#allocation4 + $0x268] sm:$0xff]
    %v146 = vld [vmem:[#allocation4 + $0x270] sm:$0xff]
    %v147 = vld [vmem:[#allocation4 + $0x278] sm:$0xff]
    %v148 = vld [vmem:[#allocation4 + $0x280] sm:$0xff]
    %v149 = vld [vmem:[#allocation4 + $0x288] sm:$0xff]
    %v150 = vld [vmem:[#allocation4 + $0x290] sm:$0xff]
    %v151 = vld [vmem:[#allocation4 + $0x298] sm:$0xff]
    %v152 = vld [vmem:[#allocation4 + $0x2a0] sm:$0xff]
    %v153 = vld [vmem:[#allocation4 + $0x2a8] sm:$0xff]
    %v154 = vld [vmem:[#allocation4 + $0x2b0] sm:$0xff]
    %v155 = vld [vmem:[#allocation4 + $0x2b8] sm:$0xff]
    %v156 = vld [vmem:[#allocation4 + $0x2c0] sm:$0xff]
    %v157 = vld [vmem:[#allocation4 + $0x2c8] sm:$0xff]
    %v158 = vld [vmem:[#allocation4 + $0x2d0] sm:$0xff]
    %v159 = vld [vmem:[#allocation4 + $0x2d8] sm:$0xff]
    %v160 = vld [vmem:[#allocation4 + $0x2e0] sm:$0xff]
    %v161 = vld [vmem:[#allocation4 + $0x2e8] sm:$0xff]
    %v162 = vld [vmem:[#allocation4 + $0x2f0] sm:$0xff]
    %v163 = vld [vmem:[#allocation4 + $0x2f8] sm:$0xff]
    %v164 = vld [vmem:[#allocation4 + $0x300] sm:$0xff]
    %v165 = vld [vmem:[#allocation4 + $0x308] sm:$0xff]
    %v166 = vld [vmem:[#allocation4 + $0x310] sm:$0xff]
    %v167 = vld [vmem:[#allocation4 + $0x318] sm:$0xff]
    %v168 = vld [vmem:[#allocation4 + $0x320] sm:$0xff]
    %v169 = vld [vmem:[#allocation4 + $0x328] sm:$0xff]
    %v170 = vld [vmem:[#allocation4 + $0x330] sm:$0xff]
    %v171 = vld [vmem:[#allocation4 + $0x338] sm:$0xff]
    %v172 = vld [vmem:[#allocation4 + $0x340] sm:$0xff]
    %v173 = vld [vmem:[#allocation4 + $0x348] sm:$0xff]
    %v174 = vld [vmem:[#allocation4 + $0x350] sm:$0xff]
    %v175 = vld [vmem:[#allocation4 + $0x358] sm:$0xff]
    %v176 = vld [vmem:[#allocation4 + $0x360] sm:$0xff]
    %v177 = vld [vmem:[#allocation4 + $0x368] sm:$0xff]
    %v178 = vld [vmem:[#allocation4 + $0x370] sm:$0xff]
    %v179 = vld [vmem:[#allocation4 + $0x378] sm:$0xff]
    %v180 = vld [vmem:[#allocation4 + $0x380] sm:$0xff]
    %v181 = vld [vmem:[#allocation4 + $0x388] sm:$0xff]
    %v182 = vld [vmem:[#allocation4 + $0x390] sm:$0xff]
    %v183 = vld [vmem:[#allocation4 + $0x398] sm:$0xff]
    %v184 = vld [vmem:[#allocation4 + $0x3a0] sm:$0xff]
    %v185 = vld [vmem:[#allocation4 + $0x3a8] sm:$0xff]
    %v186 = vld [vmem:[%s2] sm:$0xf]
    %v188 = vlaneseq
    %v189 = vshrl.u32 %v188, 7
    %v190 = vsub.s32 0, %v189
    %v191 = vrot.slane %v186, %v190
    %v192 = vlaneseq
    %v193 = vshrl.u32 %v192, 7
    %v194 = vsub.s32 1, %v193
    %v195 = vrot.slane %v186, %v194
    %v196 = vlaneseq
    %v197 = vshrl.u32 %v196, 7
    %v198 = vsub.s32 2, %v197
    %v199 = vrot.slane %v186, %v198
    %v200 = vlaneseq
    %v201 = vshrl.u32 %v200, 7
    %v202 = vsub.s32 3, %v201
    %v203 = vrot.slane %v186, %v202
    %v326 = vunpack.c.l.b16 %v68
    %v327 = vunpack.c.h.b16 %v68
    %v328 = vunpack.c.l.b16 %v69
    %v329 = vunpack.c.h.b16 %v69
    %v330 = vunpack.c.l.b16 %v70
    %v331 = vunpack.c.h.b16 %v70
    %v332 = vunpack.c.l.b16 %v71
    %v333 = vunpack.c.h.b16 %v71
    %v334 = vunpack.c.l.b16 %v72
    %v335 = vunpack.c.h.b16 %v72
    %v336 = vunpack.c.l.b16 %v73
    %v337 = vunpack.c.h.b16 %v73
    %v338 = vunpack.c.l.b16 %v74
    %v339 = vunpack.c.h.b16 %v74
    %v340 = vunpack.c.l.b16 %v75
    %v341 = vunpack.c.h.b16 %v75
    %v342 = vunpack.c.l.b16 %v76
    %v343 = vunpack.c.h.b16 %v76
    %v344 = vunpack.c.l.b16 %v77
    %v345 = vunpack.c.h.b16 %v77
    %v346 = vunpack.c.l.b16 %v78
    %v347 = vunpack.c.h.b16 %v78
    %v348 = vunpack.c.l.b16 %v79
    %v349 = vunpack.c.h.b16 %v79
    %v350 = vunpack.c.l.b16 %v80
    %v351 = vunpack.c.h.b16 %v80
    %v352 = vunpack.c.l.b16 %v81
    %v353 = vunpack.c.h.b16 %v81
    %v354 = vunpack.c.l.b16 %v82
    %v355 = vunpack.c.h.b16 %v82
    %v356 = vunpack.c.l.b16 %v83
    %v357 = vunpack.c.h.b16 %v83
    %v358 = vunpack.c.l.b16 %v84
    %v359 = vunpack.c.h.b16 %v84
    %v360 = vunpack.c.l.b16 %v85
    %v361 = vunpack.c.h.b16 %v85
    %v362 = vunpack.c.l.b16 %v86
    %v363 = vunpack.c.h.b16 %v86
    %v364 = vunpack.c.l.b16 %v87
    %v365 = vunpack.c.h.b16 %v87
    %v366 = vunpack.c.l.b16 %v88
    %v367 = vunpack.c.h.b16 %v88
    %v368 = vunpack.c.l.b16 %v89
    %v369 = vunpack.c.h.b16 %v89
    %v370 = vunpack.c.l.b16 %v90
    %v371 = vunpack.c.h.b16 %v90
    %v372 = vunpack.c.l.b16 %v91
    %v373 = vunpack.c.h.b16 %v91
    %v374 = vunpack.c.l.b16 %v92
    %v375 = vunpack.c.h.b16 %v92
    %v376 = vunpack.c.l.b16 %v93
    %v377 = vunpack.c.h.b16 %v93
    %v378 = vunpack.c.l.b16 %v94
    %v379 = vunpack.c.h.b16 %v94
    %v380 = vunpack.c.l.b16 %v95
    %v381 = vunpack.c.h.b16 %v95
    %v382 = vunpack.c.l.b16 %v96
    %v383 = vunpack.c.h.b16 %v96
    %v384 = vunpack.c.l.b16 %v97
    %v385 = vunpack.c.h.b16 %v97
    %v386 = vunpack.c.l.b16 %v98
    %v387 = vunpack.c.h.b16 %v98
    %v388 = vunpack.c.l.b16 %v99
    %v389 = vunpack.c.h.b16 %v99
    %v390 = vunpack.c.l.b16 %v100
    %v391 = vunpack.c.h.b16 %v100
    %v392 = vunpack.c.l.b16 %v101
    %v393 = vunpack.c.h.b16 %v101
    %v394 = vunpack.c.l.b16 %v102
    %v395 = vunpack.c.h.b16 %v102
    %v396 = vunpack.c.l.b16 %v103
    %v397 = vunpack.c.h.b16 %v103
    %v398 = vunpack.c.l.b16 %v104
    %v399 = vunpack.c.h.b16 %v104
    %v400 = vunpack.c.l.b16 %v105
    %v401 = vunpack.c.h.b16 %v105
    %v402 = vunpack.c.l.b16 %v106
    %v403 = vunpack.c.h.b16 %v106
    %v404 = vunpack.c.l.b16 %v107
    %v405 = vunpack.c.h.b16 %v107
    %v406 = vunpack.c.l.b16 %v108
    %v407 = vunpack.c.h.b16 %v108
    %v408 = vunpack.c.l.b16 %v109
    %v409 = vunpack.c.h.b16 %v109
    %v410 = vunpack.c.l.b16 %v110
    %v411 = vunpack.c.h.b16 %v110
    %v412 = vunpack.c.l.b16 %v111
    %v413 = vunpack.c.h.b16 %v111
    %v414 = vunpack.c.l.b16 %v112
    %v415 = vunpack.c.h.b16 %v112
    %v416 = vunpack.c.l.b16 %v113
    %v417 = vunpack.c.h.b16 %v113
    %v418 = vunpack.c.l.b16 %v114
    %v419 = vunpack.c.h.b16 %v114
    %v420 = vunpack.c.l.b16 %v115
    %v421 = vunpack.c.h.b16 %v115
    %v422 = vunpack.c.l.b16 %v116
    %v423 = vunpack.c.h.b16 %v116
    %v424 = vunpack.c.l.b16 %v117
    %v425 = vunpack.c.h.b16 %v117
    %v426 = vunpack.c.l.b16 %v118
    %v427 = vunpack.c.h.b16 %v118
    %v428 = vunpack.c.l.b16 %v119
    %v429 = vunpack.c.h.b16 %v119
    %v430 = vunpack.c.l.b16 %v120
    %v431 = vunpack.c.h.b16 %v120
    %v432 = vunpack.c.l.b16 %v121
    %v433 = vunpack.c.h.b16 %v121
    %v434 = vunpack.c.l.b16 %v122
    %v435 = vunpack.c.h.b16 %v122
    %v436 = vunpack.c.l.b16 %v123
    %v437 = vunpack.c.h.b16 %v123
    %v438 = vunpack.c.l.b16 %v124
    %v439 = vunpack.c.h.b16 %v124
    %v440 = vunpack.c.l.b16 %v125
    %v441 = vunpack.c.h.b16 %v125
    %v442 = vunpack.c.l.b16 %v126
    %v443 = vunpack.c.h.b16 %v126
    %v444 = vunpack.c.l.b16 %v127
    %v445 = vunpack.c.h.b16 %v127
    %v446 = vunpack.c.l.b16 %v128
    %v447 = vunpack.c.h.b16 %v128
    %v448 = vunpack.c.l.b16 %v129
    %v449 = vunpack.c.h.b16 %v129
    %v450 = vunpack.c.l.b16 %v130
    %v451 = vunpack.c.h.b16 %v130
    %v452 = vunpack.c.l.b16 %v131
    %v453 = vunpack.c.h.b16 %v131
    %v454 = vunpack.c.l.b16 %v132
    %v455 = vunpack.c.h.b16 %v132
    %v456 = vunpack.c.l.b16 %v133
    %v457 = vunpack.c.h.b16 %v133
    %v458 = vunpack.c.l.b16 %v134
    %v459 = vunpack.c.h.b16 %v134
    %v460 = vunpack.c.l.b16 %v135
    %v461 = vunpack.c.h.b16 %v135
    %v462 = vunpack.c.l.b16 %v136
    %v463 = vunpack.c.h.b16 %v136
    %v464 = vunpack.c.l.b16 %v137
    %v465 = vunpack.c.h.b16 %v137
    %v466 = vunpack.c.l.b16 %v138
    %v467 = vunpack.c.h.b16 %v138
    %v468 = vunpack.c.l.b16 %v139
    %v469 = vunpack.c.h.b16 %v139
    %v470 = vunpack.c.l.b16 %v140
    %v471 = vunpack.c.h.b16 %v140
    %v472 = vunpack.c.l.b16 %v141
    %v473 = vunpack.c.h.b16 %v141
    %v474 = vunpack.c.l.b16 %v142
    %v475 = vunpack.c.h.b16 %v142
    %v476 = vunpack.c.l.b16 %v143
    %v477 = vunpack.c.h.b16 %v143
    %v478 = vunpack.c.l.b16 %v144
    %v479 = vunpack.c.h.b16 %v144
    %v480 = vunpack.c.l.b16 %v145
    %v481 = vunpack.c.h.b16 %v145
    %v482 = vunpack.c.l.b16 %v146
    %v483 = vunpack.c.h.b16 %v146
    %v484 = vunpack.c.l.b16 %v147
    %v485 = vunpack.c.h.b16 %v147
    %v486 = vunpack.c.l.b16 %v148
    %v487 = vunpack.c.h.b16 %v148
    %v488 = vunpack.c.l.b16 %v149
    %v489 = vunpack.c.h.b16 %v149
    %v490 = vunpack.c.l.b16 %v150
    %v491 = vunpack.c.h.b16 %v150
    %v492 = vunpack.c.l.b16 %v151
    %v493 = vunpack.c.h.b16 %v151
    %v494 = vunpack.c.l.b16 %v152
    %v495 = vunpack.c.h.b16 %v152
    %v496 = vunpack.c.l.b16 %v153
    %v497 = vunpack.c.h.b16 %v153
    %v498 = vunpack.c.l.b16 %v154
    %v499 = vunpack.c.h.b16 %v154
    %v500 = vunpack.c.l.b16 %v155
    %v501 = vunpack.c.h.b16 %v155
    %v502 = vunpack.c.l.b16 %v156
    %v503 = vunpack.c.h.b16 %v156
    %v504 = vunpack.c.l.b16 %v157
    %v505 = vunpack.c.h.b16 %v157
    %v506 = vunpack.c.l.b16 %v158
    %v507 = vunpack.c.h.b16 %v158
    %v508 = vunpack.c.l.b16 %v159
    %v509 = vunpack.c.h.b16 %v159
    %v510 = vunpack.c.l.b16 %v160
    %v511 = vunpack.c.h.b16 %v160
    %v512 = vunpack.c.l.b16 %v161
    %v513 = vunpack.c.h.b16 %v161
    %v514 = vunpack.c.l.b16 %v162
    %v515 = vunpack.c.h.b16 %v162
    %v516 = vunpack.c.l.b16 %v163
    %v517 = vunpack.c.h.b16 %v163
    %v518 = vunpack.c.l.b16 %v164
    %v519 = vunpack.c.h.b16 %v164
    %v520 = vunpack.c.l.b16 %v165
    %v521 = vunpack.c.h.b16 %v165
    %v522 = vunpack.c.l.b16 %v166
    %v523 = vunpack.c.h.b16 %v166
    %v524 = vunpack.c.l.b16 %v167
    %v525 = vunpack.c.h.b16 %v167
    %v526 = vunpack.c.l.b16 %v168
    %v527 = vunpack.c.h.b16 %v168
    %v528 = vunpack.c.l.b16 %v169
    %v529 = vunpack.c.h.b16 %v169
    %v530 = vunpack.c.l.b16 %v170
    %v531 = vunpack.c.h.b16 %v170
    %v532 = vunpack.c.l.b16 %v171
    %v533 = vunpack.c.h.b16 %v171
    %v534 = vunpack.c.l.b16 %v172
    %v535 = vunpack.c.h.b16 %v172
    %v536 = vunpack.c.l.b16 %v173
    %v537 = vunpack.c.h.b16 %v173
    %v538 = vunpack.c.l.b16 %v174
    %v539 = vunpack.c.h.b16 %v174
    %v540 = vunpack.c.l.b16 %v175
    %v541 = vunpack.c.h.b16 %v175
    %v542 = vunpack.c.l.b16 %v176
    %v543 = vunpack.c.h.b16 %v176
    %v544 = vunpack.c.l.b16 %v177
    %v545 = vunpack.c.h.b16 %v177
    %v546 = vunpack.c.l.b16 %v178
    %v547 = vunpack.c.h.b16 %v178
    %v548 = vunpack.c.l.b16 %v179
    %v549 = vunpack.c.h.b16 %v179
    %v550 = vunpack.c.l.b16 %v180
    %v551 = vunpack.c.h.b16 %v180
    %v552 = vunpack.c.l.b16 %v181
    %v553 = vunpack.c.h.b16 %v181
    %v554 = vunpack.c.l.b16 %v182
    %v555 = vunpack.c.h.b16 %v182
    %v556 = vunpack.c.l.b16 %v183
    %v557 = vunpack.c.h.b16 %v183
    %v558 = vunpack.c.l.b16 %v184
    %v559 = vunpack.c.h.b16 %v184
    %v560 = vunpack.c.l.b16 %v185
    %v561 = vunpack.c.h.b16 %v185
    %v562 = vpack.c.b16 %v330, %v326
    %v563 = vpack.c.b16 %v331, %v327
    %v564 = vpack.c.b16 %v332, %v328
    %v565 = vpack.c.b16 %v333, %v329
    %v566 = vpack.c.b16 %v338, %v334
    %v567 = vpack.c.b16 %v339, %v335
    %v568 = vpack.c.b16 %v340, %v336
    %v569 = vpack.c.b16 %v341, %v337
    %v570 = vpack.c.b16 %v346, %v342
    %v571 = vpack.c.b16 %v347, %v343
    %v572 = vpack.c.b16 %v348, %v344
    %v573 = vpack.c.b16 %v349, %v345
    %v574 = vpack.c.b16 %v354, %v350
    %v575 = vpack.c.b16 %v355, %v351
    %v576 = vpack.c.b16 %v356, %v352
    %v577 = vpack.c.b16 %v357, %v353
    %v578 = vpack.c.b16 %v362, %v358
    %v579 = vpack.c.b16 %v363, %v359
    %v580 = vpack.c.b16 %v364, %v360
    %v581 = vpack.c.b16 %v365, %v361
    %v582 = vpack.c.b16 %v370, %v366
    %v583 = vpack.c.b16 %v371, %v367
    %v584 = vpack.c.b16 %v372, %v368
    %v585 = vpack.c.b16 %v373, %v369
    %v586 = vpack.c.b16 %v378, %v374
    %v587 = vpack.c.b16 %v379, %v375
    %v588 = vpack.c.b16 %v380, %v376
    %v589 = vpack.c.b16 %v381, %v377
    %v590 = vpack.c.b16 %v386, %v382
    %v591 = vpack.c.b16 %v387, %v383
    %v592 = vpack.c.b16 %v388, %v384
    %v593 = vpack.c.b16 %v389, %v385
    %v594 = vpack.c.b16 %v394, %v390
    %v595 = vpack.c.b16 %v395, %v391
    %v596 = vpack.c.b16 %v396, %v392
    %v597 = vpack.c.b16 %v397, %v393
    %v598 = vpack.c.b16 %v402, %v398
    %v599 = vpack.c.b16 %v403, %v399
    %v600 = vpack.c.b16 %v404, %v400
    %v601 = vpack.c.b16 %v405, %v401
    %v602 = vpack.c.b16 %v410, %v406
    %v603 = vpack.c.b16 %v411, %v407
    %v604 = vpack.c.b16 %v412, %v408
    %v605 = vpack.c.b16 %v413, %v409
    %v606 = vpack.c.b16 %v418, %v414
    %v607 = vpack.c.b16 %v419, %v415
    %v608 = vpack.c.b16 %v420, %v416
    %v609 = vpack.c.b16 %v421, %v417
    %v610 = vpack.c.b16 %v426, %v422
    %v611 = vpack.c.b16 %v427, %v423
    %v612 = vpack.c.b16 %v428, %v424
    %v613 = vpack.c.b16 %v429, %v425
    %v614 = vpack.c.b16 %v434, %v430
    %v615 = vpack.c.b16 %v435, %v431
    %v616 = vpack.c.b16 %v436, %v432
    %v617 = vpack.c.b16 %v437, %v433
    %v618 = vpack.c.b16 %v442, %v438
    %v619 = vpack.c.b16 %v443, %v439
    %v620 = vpack.c.b16 %v444, %v440
    %v621 = vpack.c.b16 %v445, %v441
    %v622 = vpack.c.b16 %v450, %v446
    %v623 = vpack.c.b16 %v451, %v447
    %v624 = vpack.c.b16 %v452, %v448
    %v625 = vpack.c.b16 %v453, %v449
    %v626 = vpack.c.b16 %v458, %v454
    %v627 = vpack.c.b16 %v459, %v455
    %v628 = vpack.c.b16 %v460, %v456
    %v629 = vpack.c.b16 %v461, %v457
    %v630 = vpack.c.b16 %v466, %v462
    %v631 = vpack.c.b16 %v467, %v463
    %v632 = vpack.c.b16 %v468, %v464
    %v633 = vpack.c.b16 %v469, %v465
    %v634 = vpack.c.b16 %v474, %v470
    %v635 = vpack.c.b16 %v475, %v471
    %v636 = vpack.c.b16 %v476, %v472
    %v637 = vpack.c.b16 %v477, %v473
    %v638 = vpack.c.b16 %v482, %v478
    %v639 = vpack.c.b16 %v483, %v479
    %v640 = vpack.c.b16 %v484, %v480
    %v641 = vpack.c.b16 %v485, %v481
    %v642 = vpack.c.b16 %v490, %v486
    %v643 = vpack.c.b16 %v491, %v487
    %v644 = vpack.c.b16 %v492, %v488
    %v645 = vpack.c.b16 %v493, %v489
    %v646 = vpack.c.b16 %v498, %v494
    %v647 = vpack.c.b16 %v499, %v495
    %v648 = vpack.c.b16 %v500, %v496
    %v649 = vpack.c.b16 %v501, %v497
    %v650 = vpack.c.b16 %v506, %v502
    %v651 = vpack.c.b16 %v507, %v503
    %v652 = vpack.c.b16 %v508, %v504
    %v653 = vpack.c.b16 %v509, %v505
    %v654 = vpack.c.b16 %v514, %v510
    %v655 = vpack.c.b16 %v515, %v511
    %v656 = vpack.c.b16 %v516, %v512
    %v657 = vpack.c.b16 %v517, %v513
    %v658 = vpack.c.b16 %v522, %v518
    %v659 = vpack.c.b16 %v523, %v519
    %v660 = vpack.c.b16 %v524, %v520
    %v661 = vpack.c.b16 %v525, %v521
    %v662 = vpack.c.b16 %v530, %v526
    %v663 = vpack.c.b16 %v531, %v527
    %v664 = vpack.c.b16 %v532, %v528
    %v665 = vpack.c.b16 %v533, %v529
    %v666 = vpack.c.b16 %v538, %v534
    %v667 = vpack.c.b16 %v539, %v535
    %v668 = vpack.c.b16 %v540, %v536
    %v669 = vpack.c.b16 %v541, %v537
    %v670 = vpack.c.b16 %v546, %v542
    %v671 = vpack.c.b16 %v547, %v543
    %v672 = vpack.c.b16 %v548, %v544
    %v673 = vpack.c.b16 %v549, %v545
    %v674 = vpack.c.b16 %v554, %v550
    %v675 = vpack.c.b16 %v555, %v551
    %v676 = vpack.c.b16 %v556, %v552
    %v677 = vpack.c.b16 %v557, %v553
    %v678 = vpack.c.b16 %v558, %v558
    %v679 = vpack.c.b16 %v559, %v559
    %v680 = vpack.c.b16 %v560, %v560
    %v681 = vpack.c.b16 %v561, %v561
    %vm798 = vcmask 711680
    %v800 = vsel %vm798, %v67, 0
    %vm802 = vcmask 1042432
    %vm803 = vcmask 1043456
    %v804 = vsel %vm802, 4294967295, 65535
    %v805 = vsel %vm803, %v804, 0
    %v807 = vand.u32 %v678, %v805
    %v810 = vand.u32 %v679, %v805
    %v813 = vand.u32 %v680, %v805
    %v816 = vand.u32 %v681, %v805
    %818 = vmatprep.subr.bf16.mxu0 %v563
    %819 = vmatpush1.bf16.msra.mxu0 %v562
    %820 = vmatprep.subr.bf16.mxu0 %v567
    %821 = vmatpush1.bf16.msra.mxu0 %v566
    %822 = vmatprep.subr.bf16.mxu0 %v571
    %823 = vmatpush1.bf16.msra.mxu0 %v570
    %824 = vmatprep.subr.bf16.mxu0 %v575
    %825 = vmatpush1.bf16.msra.mxu0 %v574
    %826 = vmatprep.subr.bf16.mxu0 %v579
    %827 = vmatpush1.bf16.msra.mxu0 %v578
    %828 = vmatprep.subr.bf16.mxu0 %v583
    %829 = vmatpush1.bf16.msra.mxu0 %v582
    %830 = vmatprep.subr.bf16.mxu0 %v587
    %831 = vmatpush1.bf16.msra.mxu0 %v586
    %832 = vmatprep.subr.bf16.mxu0 %v591
    %833 = vmatpush1.bf16.msra.mxu0 %v590
    %834 = vmatprep.subr.bf16.mxu0 %v595
    %835 = vmatpush1.bf16.msra.mxu0 %v594
    %836 = vmatprep.subr.bf16.mxu0 %v599
    %837 = vmatpush1.bf16.msra.mxu0 %v598
    %838 = vmatprep.subr.bf16.mxu0 %v603
    %839 = vmatpush1.bf16.msra.mxu0 %v602
    %840 = vmatprep.subr.bf16.mxu0 %v607
    %841 = vmatpush1.bf16.msra.mxu0 %v606
    %842 = vmatprep.subr.bf16.mxu0 %v611
    %843 = vmatpush1.bf16.msra.mxu0 %v610
    %844 = vmatprep.subr.bf16.mxu0 %v615
    %845 = vmatpush1.bf16.msra.mxu0 %v614
    %846 = vmatprep.subr.bf16.mxu0 %v619
    %847 = vmatpush1.bf16.msra.mxu0 %v618
    %848 = vmatprep.subr.bf16.mxu0 %v623
    %849 = vmatpush1.bf16.msra.mxu0 %v622
    %850 = vmatprep.mubr.bf16.mxu0 %v65
    %851 = vmatmul.mubr.bf16.gmra.mrb[0].mxu0 %v64
    %v852 = vpop.f32.mrb[0].mxu0
    %v853 = vadd.f32 %v191, %v852
    %v854 = vpop.f32.mrb[0].mxu0
    %v855 = vadd.f32 %v195, %v854
    %v856 = vpop.f32.mrb[0].mxu0
    %v857 = vpop.f32.mrb[0].mxu0
    %858 = vdwg.mxu0
    %859 = vmatprep.subr.bf16.mxu0 %v627
    %860 = vmatpush1.bf16.msra.mxu0 %v626
    %861 = vmatprep.subr.bf16.mxu0 %v631
    %862 = vmatpush1.bf16.msra.mxu0 %v630
    %863 = vmatprep.subr.bf16.mxu0 %v635
    %864 = vmatpush1.bf16.msra.mxu0 %v634
    %865 = vmatprep.subr.bf16.mxu0 %v639
    %866 = vmatpush1.bf16.msra.mxu0 %v638
    %867 = vmatprep.subr.bf16.mxu0 %v643
    %868 = vmatpush1.bf16.msra.mxu0 %v642
    %869 = vmatprep.subr.bf16.mxu0 %v647
    %870 = vmatpush1.bf16.msra.mxu0 %v646
    %871 = vmatprep.subr.bf16.mxu0 %v651
    %872 = vmatpush1.bf16.msra.mxu0 %v650
    %873 = vmatprep.subr.bf16.mxu0 %v655
    %874 = vmatpush1.bf16.msra.mxu0 %v654
    %875 = vmatprep.subr.bf16.mxu0 %v659
    %876 = vmatpush1.bf16.msra.mxu0 %v658
    %877 = vmatprep.subr.bf16.mxu0 %v663
    %878 = vmatpush1.bf16.msra.mxu0 %v662
    %879 = vmatprep.subr.bf16.mxu0 %v667
    %880 = vmatpush1.bf16.msra.mxu0 %v666
    %881 = vmatprep.subr.bf16.mxu0 %v671
    %882 = vmatpush1.bf16.msra.mxu0 %v670
    %883 = vmatprep.subr.bf16.mxu0 %v675
    %884 = vmatpush1.bf16.msra.mxu0 %v674
    %885 = vmatprep.subr.bf16.mxu0 %v810
    %886 = vmatpush1.bf16.msra.mxu0 %v807
    %887 = vmatprep.subr.bf16.mxu0 0
    %888 = vmatpush1.bf16.msra.mxu0 0
    %889 = vmatprep.subr.bf16.mxu0 0
    %890 = vmatpush1.bf16.msra.mxu0 0
    %891 = vmatprep.mubr.bf16.mxu0 %v800
    %892 = vmatmul.mubr.bf16.gmra.mrb[0].mxu0 %v66
    %v893 = vpop.f32.mrb[0].mxu0
    %v894 = vadd.f32 %v853, %v893
    %v895 = vpop.f32.mrb[0].mxu0
    %v896 = vadd.f32 %v855, %v895
    %v897 = vpop.f32.mrb[0].mxu0
    %v898 = vpop.f32.mrb[0].mxu0
    %899 = vdwg.mxu0
    %900 = vmatprep.subr.bf16.mxu0 %v565
    %901 = vmatpush1.bf16.msra.mxu0 %v564
    %902 = vmatprep.subr.bf16.mxu0 %v569
    %903 = vmatpush1.bf16.msra.mxu0 %v568
    %904 = vmatprep.subr.bf16.mxu0 %v573
    %905 = vmatpush1.bf16.msra.mxu0 %v572
    %906 = vmatprep.subr.bf16.mxu0 %v577
    %907 = vmatpush1.bf16.msra.mxu0 %v576
    %908 = vmatprep.subr.bf16.mxu0 %v581
    %909 = vmatpush1.bf16.msra.mxu0 %v580
    %910 = vmatprep.subr.bf16.mxu0 %v585
    %911 = vmatpush1.bf16.msra.mxu0 %v584
    %912 = vmatprep.subr.bf16.mxu0 %v589
    %913 = vmatpush1.bf16.msra.mxu0 %v588
    %914 = vmatprep.subr.bf16.mxu0 %v593
    %915 = vmatpush1.bf16.msra.mxu0 %v592
    %916 = vmatprep.subr.bf16.mxu0 %v597
    %917 = vmatpush1.bf16.msra.mxu0 %v596
    %918 = vmatprep.subr.bf16.mxu0 %v601
    %919 = vmatpush1.bf16.msra.mxu0 %v600
    %920 = vmatprep.subr.bf16.mxu0 %v605
    %921 = vmatpush1.bf16.msra.mxu0 %v604
    %922 = vmatprep.subr.bf16.mxu0 %v609
    %923 = vmatpush1.bf16.msra.mxu0 %v608
    %924 = vmatprep.subr.bf16.mxu0 %v613
    %925 = vmatpush1.bf16.msra.mxu0 %v612
    %926 = vmatprep.subr.bf16.mxu0 %v617
    %927 = vmatpush1.bf16.msra.mxu0 %v616
    %928 = vmatprep.subr.bf16.mxu0 %v621
    %929 = vmatpush1.bf16.msra.mxu0 %v620
    %930 = vmatprep.subr.bf16.mxu0 %v625
    %931 = vmatpush1.bf16.msra.mxu0 %v624
    %932 = vmatprep.mubr.bf16.mxu0 %v65
    %933 = vmatmul.mubr.bf16.gmra.mrb[0].mxu0 %v64
    %v934 = vpop.f32.mrb[0].mxu0
    %v935 = vadd.f32 %v199, %v934
    %v936 = vpop.f32.mrb[0].mxu0
    %v937 = vadd.f32 %v203, %v936
    %v938 = vpop.f32.mrb[0].mxu0
    %v939 = vpop.f32.mrb[0].mxu0
    %940 = vdwg.mxu0
    %941 = vmatprep.subr.bf16.mxu0 %v629
    %942 = vmatpush1.bf16.msra.mxu0 %v628
    %943 = vmatprep.subr.bf16.mxu0 %v633
    %944 = vmatpush1.bf16.msra.mxu0 %v632
    %945 = vmatprep.subr.bf16.mxu0 %v637
    %946 = vmatpush1.bf16.msra.mxu0 %v636
    %947 = vmatprep.subr.bf16.mxu0 %v641
    %948 = vmatpush1.bf16.msra.mxu0 %v640
    %949 = vmatprep.subr.bf16.mxu0 %v645
    %950 = vmatpush1.bf16.msra.mxu0 %v644
    %951 = vmatprep.subr.bf16.mxu0 %v649
    %952 = vmatpush1.bf16.msra.mxu0 %v648
    %953 = vmatprep.subr.bf16.mxu0 %v653
    %954 = vmatpush1.bf16.msra.mxu0 %v652
    %955 = vmatprep.subr.bf16.mxu0 %v657
    %956 = vmatpush1.bf16.msra.mxu0 %v656
    %957 = vmatprep.subr.bf16.mxu0 %v661
    %958 = vmatpush1.bf16.msra.mxu0 %v660
    %959 = vmatprep.subr.bf16.mxu0 %v665
    %960 = vmatpush1.bf16.msra.mxu0 %v664
    %961 = vmatprep.subr.bf16.mxu0 %v669
    %962 = vmatpush1.bf16.msra.mxu0 %v668
    %963 = vmatprep.subr.bf16.mxu0 %v673
    %964 = vmatpush1.bf16.msra.mxu0 %v672
    %965 = vmatprep.subr.bf16.mxu0 %v677
    %966 = vmatpush1.bf16.msra.mxu0 %v676
    %967 = vmatprep.subr.bf16.mxu0 %v816
    %968 = vmatpush1.bf16.msra.mxu0 %v813
    %969 = vmatprep.subr.bf16.mxu0 0
    %970 = vmatpush1.bf16.msra.mxu0 0
    %971 = vmatprep.subr.bf16.mxu0 0
    %972 = vmatpush1.bf16.msra.mxu0 0
    %973 = vmatprep.mubr.bf16.mxu0 %v800
    %974 = vmatmul.mubr.bf16.gmra.mrb[0].mxu0 %v66
    %v975 = vpop.f32.mrb[0].mxu0
    %v976 = vadd.f32 %v935, %v975
    %v977 = vpop.f32.mrb[0].mxu0
    %v978 = vadd.f32 %v937, %v977
    %v979 = vpop.f32.mrb[0].mxu0
    %v980 = vpop.f32.mrb[0].mxu0
    %981 = vdwg.mxu0
    %v982 = vmax.f32 %v894, 0.0
    %v983 = vmax.f32 %v896, 0.0
    %v984 = vmax.f32 %v976, 0.0
    %v985 = vmax.f32 %v978, 0.0
    %v986 = vpack.c.bf16 %v982, %v982
    %v987 = vpack.c.bf16 %v983, %v983
    %v988 = vpack.c.bf16 %v984, %v984
    %v989 = vpack.c.bf16 %v985, %v985
    %v990 = vld [vmem:[#allocation6] sm:$0xf]
    %v991 = vld [vmem:[#allocation6 + $0x4] sm:$0xf]
    %v992 = vld [vmem:[#allocation6 + $0x8] sm:$0xf]
    %v993 = vld [vmem:[#allocation6 + $0xc] sm:$0xf]
    %v994 = vld [vmem:[#allocation6 + $0x10] sm:$0xf]
    %v995 = vld [vmem:[#allocation6 + $0x14] sm:$0xf]
    %v996 = vld [vmem:[#allocation6 + $0x18] sm:$0xf]
    %v997 = vld [vmem:[#allocation6 + $0x1c] sm:$0xf]
    %v998 = vld [vmem:[#allocation6 + $0x20] sm:$0xf]
    %v999 = vld [vmem:[#allocation6 + $0x24] sm:$0xf]
    %v1000 = vld [vmem:[#allocation6 + $0x28] sm:$0xf]
    %v1001 = vld [vmem:[#allocation6 + $0x2c] sm:$0xf]
    %v1002 = vld [vmem:[#allocation6 + $0x30] sm:$0xf]
    %v1003 = vld [vmem:[#allocation6 + $0x34] sm:$0xf]
    %v1004 = vld [vmem:[#allocation6 + $0x38] sm:$0xf]
    %v1005 = vld [vmem:[#allocation6 + $0x3c] sm:$0xf]
    %v1006 = vld [vmem:[#allocation6 + $0x40] sm:$0xf]
    %v1007 = vld [vmem:[#allocation6 + $0x44] sm:$0xf]
    %v1008 = vld [vmem:[#allocation6 + $0x48] sm:$0xf]
    %v1009 = vld [vmem:[#allocation6 + $0x4c] sm:$0xf]
    %v1010 = vld [vmem:[#allocation6 + $0x50] sm:$0xf]
    %v1011 = vld [vmem:[#allocation6 + $0x54] sm:$0xf]
    %v1012 = vld [vmem:[#allocation6 + $0x58] sm:$0xf]
    %v1013 = vld [vmem:[#allocation6 + $0x5c] sm:$0xf]
    %v1014 = vld [vmem:[#allocation6 + $0x60] sm:$0xf]
    %v1015 = vld [vmem:[#allocation6 + $0x64] sm:$0xf]
    %v1016 = vld [vmem:[#allocation6 + $0x68] sm:$0xf]
    %v1017 = vld [vmem:[#allocation6 + $0x6c] sm:$0xf]
    %v1018 = vld [vmem:[#allocation6 + $0x70] sm:$0xf]
    %v1019 = vld [vmem:[#allocation6 + $0x74] sm:$0xf]
    %v1020 = vld [vmem:[#allocation6 + $0x78] sm:$0xf]
    %v1021 = vld [vmem:[#allocation6 + $0x7c] sm:$0xf]
    %v1022 = vld [vmem:[#allocation6 + $0x80] sm:$0xf]
    %v1023 = vld [vmem:[#allocation6 + $0x84] sm:$0xf]
    %v1024 = vld [vmem:[#allocation6 + $0x88] sm:$0xf]
    %v1025 = vld [vmem:[#allocation6 + $0x8c] sm:$0xf]
    %v1026 = vld [vmem:[#allocation6 + $0x90] sm:$0xf]
    %v1027 = vld [vmem:[#allocation6 + $0x94] sm:$0xf]
    %v1028 = vld [vmem:[#allocation6 + $0x98] sm:$0xf]
    %v1029 = vld [vmem:[#allocation6 + $0x9c] sm:$0xf]
    %v1030 = vld [vmem:[#allocation6 + $0xa0] sm:$0xf]
    %v1031 = vld [vmem:[#allocation6 + $0xa4] sm:$0xf]
    %v1032 = vld [vmem:[#allocation6 + $0xa8] sm:$0xf]
    %v1033 = vld [vmem:[#allocation6 + $0xac] sm:$0xf]
    %v1034 = vld [vmem:[#allocation6 + $0xb0] sm:$0xf]
    %v1035 = vld [vmem:[#allocation6 + $0xb4] sm:$0xf]
    %v1036 = vld [vmem:[#allocation6 + $0xb8] sm:$0xf]
    %v1037 = vld [vmem:[#allocation6 + $0xbc] sm:$0xf]
    %v1038 = vld [vmem:[#allocation6 + $0xc0] sm:$0xf]
    %v1039 = vld [vmem:[#allocation6 + $0xc4] sm:$0xf]
    %v1040 = vld [vmem:[#allocation6 + $0xc8] sm:$0xf]
    %v1041 = vld [vmem:[#allocation6 + $0xcc] sm:$0xf]
    %v1042 = vld [vmem:[#allocation6 + $0xd0] sm:$0xf]
    %v1043 = vld [vmem:[#allocation6 + $0xd4] sm:$0xf]
    %v1044 = vld [vmem:[#allocation6 + $0xd8] sm:$0xf]
    %v1045 = vld [vmem:[#allocation6 + $0xdc] sm:$0xf]
    %v1046 = vld [vmem:[#allocation6 + $0xe0] sm:$0xf]
    %v1047 = vld [vmem:[#allocation6 + $0xe4] sm:$0xf]
    %v1048 = vld [vmem:[#allocation6 + $0xe8] sm:$0xf]
    %v1049 = vld [vmem:[#allocation6 + $0xec] sm:$0xf]
    %v1050 = vld [vmem:[#allocation6 + $0xf0] sm:$0xf]
    %v1051 = vld [vmem:[#allocation6 + $0xf4] sm:$0xf]
    %v1052 = vld [vmem:[#allocation6 + $0xf8] sm:$0xf]
    %v1053 = vld [vmem:[#allocation6 + $0xfc] sm:$0xf]
    %v1054 = vld [vmem:[%s4] sm:$0x1]
    %v1056 = vlaneseq
    %v1057 = vshrl.u32 %v1056, 7
    %v1058 = vsub.s32 0, %v1057
    %v1059 = vrot.slane %v1054, %v1058
    %v1125 = vunpack.c.l.b16 %v990
    %v1126 = vunpack.c.l.b16 %v991
    %v1127 = vunpack.c.l.b16 %v992
    %v1128 = vunpack.c.l.b16 %v993
    %v1129 = vunpack.c.l.b16 %v994
    %v1130 = vunpack.c.l.b16 %v995
    %v1131 = vunpack.c.l.b16 %v996
    %v1132 = vunpack.c.l.b16 %v997
    %v1133 = vunpack.c.l.b16 %v998
    %v1134 = vunpack.c.l.b16 %v999
    %v1135 = vunpack.c.l.b16 %v1000
    %v1136 = vunpack.c.l.b16 %v1001
    %v1137 = vunpack.c.l.b16 %v1002
    %v1138 = vunpack.c.l.b16 %v1003
    %v1139 = vunpack.c.l.b16 %v1004
    %v1140 = vunpack.c.l.b16 %v1005
    %v1141 = vunpack.c.l.b16 %v1006
    %v1142 = vunpack.c.l.b16 %v1007
    %v1143 = vunpack.c.l.b16 %v1008
    %v1144 = vunpack.c.l.b16 %v1009
    %v1145 = vunpack.c.l.b16 %v1010
    %v1146 = vunpack.c.l.b16 %v1011
    %v1147 = vunpack.c.l.b16 %v1012
    %v1148 = vunpack.c.l.b16 %v1013
    %v1149 = vunpack.c.l.b16 %v1014
    %v1150 = vunpack.c.l.b16 %v1015
    %v1151 = vunpack.c.l.b16 %v1016
    %v1152 = vunpack.c.l.b16 %v1017
    %v1153 = vunpack.c.l.b16 %v1018
    %v1154 = vunpack.c.l.b16 %v1019
    %v1155 = vunpack.c.l.b16 %v1020
    %v1156 = vunpack.c.l.b16 %v1021
    %v1157 = vunpack.c.l.b16 %v1022
    %v1158 = vunpack.c.l.b16 %v1023
    %v1159 = vunpack.c.l.b16 %v1024
    %v1160 = vunpack.c.l.b16 %v1025
    %v1161 = vunpack.c.l.b16 %v1026
    %v1162 = vunpack.c.l.b16 %v1027
    %v1163 = vunpack.c.l.b16 %v1028
    %v1164 = vunpack.c.l.b16 %v1029
    %v1165 = vunpack.c.l.b16 %v1030
    %v1166 = vunpack.c.l.b16 %v1031
    %v1167 = vunpack.c.l.b16 %v1032
    %v1168 = vunpack.c.l.b16 %v1033
    %v1169 = vunpack.c.l.b16 %v1034
    %v1170 = vunpack.c.l.b16 %v1035
    %v1171 = vunpack.c.l.b16 %v1036
    %v1172 = vunpack.c.l.b16 %v1037
    %v1173 = vunpack.c.l.b16 %v1038
    %v1174 = vunpack.c.l.b16 %v1039
    %v1175 = vunpack.c.l.b16 %v1040
    %v1176 = vunpack.c.l.b16 %v1041
    %v1177 = vunpack.c.l.b16 %v1042
    %v1178 = vunpack.c.l.b16 %v1043
    %v1179 = vunpack.c.l.b16 %v1044
    %v1180 = vunpack.c.l.b16 %v1045
    %v1181 = vunpack.c.l.b16 %v1046
    %v1182 = vunpack.c.l.b16 %v1047
    %v1183 = vunpack.c.l.b16 %v1048
    %v1184 = vunpack.c.l.b16 %v1049
    %v1185 = vunpack.c.l.b16 %v1050
    %v1186 = vunpack.c.l.b16 %v1051
    %v1187 = vunpack.c.l.b16 %v1052
    %v1188 = vunpack.c.l.b16 %v1053
    %v1189 = vpack.c.b16 %v1126, %v1125
    %v1190 = vpack.c.b16 %v1128, %v1127
    %v1191 = vpack.c.b16 %v1130, %v1129
    %v1192 = vpack.c.b16 %v1132, %v1131
    %v1193 = vpack.c.b16 %v1134, %v1133
    %v1194 = vpack.c.b16 %v1136, %v1135
    %v1195 = vpack.c.b16 %v1138, %v1137
    %v1196 = vpack.c.b16 %v1140, %v1139
    %v1197 = vpack.c.b16 %v1142, %v1141
    %v1198 = vpack.c.b16 %v1144, %v1143
    %v1199 = vpack.c.b16 %v1146, %v1145
    %v1200 = vpack.c.b16 %v1148, %v1147
    %v1201 = vpack.c.b16 %v1150, %v1149
    %v1202 = vpack.c.b16 %v1152, %v1151
    %v1203 = vpack.c.b16 %v1154, %v1153
    %v1204 = vpack.c.b16 %v1156, %v1155
    %v1205 = vpack.c.b16 %v1158, %v1157
    %v1206 = vpack.c.b16 %v1160, %v1159
    %v1207 = vpack.c.b16 %v1162, %v1161
    %v1208 = vpack.c.b16 %v1164, %v1163
    %v1209 = vpack.c.b16 %v1166, %v1165
    %v1210 = vpack.c.b16 %v1168, %v1167
    %v1211 = vpack.c.b16 %v1170, %v1169
    %v1212 = vpack.c.b16 %v1172, %v1171
    %v1213 = vpack.c.b16 %v1174, %v1173
    %v1214 = vpack.c.b16 %v1176, %v1175
    %v1215 = vpack.c.b16 %v1178, %v1177
    %v1216 = vpack.c.b16 %v1180, %v1179
    %v1217 = vpack.c.b16 %v1182, %v1181
    %v1218 = vpack.c.b16 %v1184, %v1183
    %v1219 = vpack.c.b16 %v1186, %v1185
    %v1220 = vpack.c.b16 %v1188, %v1187
    %1253 = vmatprep.subr.bf16.mxu0 0
    %1254 = vmatpush1.bf16.msra.mxu0 %v1189
    %1255 = vmatprep.subr.bf16.mxu0 0
    %1256 = vmatpush1.bf16.msra.mxu0 %v1190
    %1257 = vmatprep.subr.bf16.mxu0 0
    %1258 = vmatpush1.bf16.msra.mxu0 %v1191
    %1259 = vmatprep.subr.bf16.mxu0 0
    %1260 = vmatpush1.bf16.msra.mxu0 %v1192
    %1261 = vmatprep.subr.bf16.mxu0 0
    %1262 = vmatpush1.bf16.msra.mxu0 %v1193
    %1263 = vmatprep.subr.bf16.mxu0 0
    %1264 = vmatpush1.bf16.msra.mxu0 %v1194
    %1265 = vmatprep.subr.bf16.mxu0 0
    %1266 = vmatpush1.bf16.msra.mxu0 %v1195
    %1267 = vmatprep.subr.bf16.mxu0 0
    %1268 = vmatpush1.bf16.msra.mxu0 %v1196
    %1269 = vmatprep.subr.bf16.mxu0 0
    %1270 = vmatpush1.bf16.msra.mxu0 %v1197
    %1271 = vmatprep.subr.bf16.mxu0 0
    %1272 = vmatpush1.bf16.msra.mxu0 %v1198
    %1273 = vmatprep.subr.bf16.mxu0 0
    %1274 = vmatpush1.bf16.msra.mxu0 %v1199
    %1275 = vmatprep.subr.bf16.mxu0 0
    %1276 = vmatpush1.bf16.msra.mxu0 %v1200
    %1277 = vmatprep.subr.bf16.mxu0 0
    %1278 = vmatpush1.bf16.msra.mxu0 %v1201
    %1279 = vmatprep.subr.bf16.mxu0 0
    %1280 = vmatpush1.bf16.msra.mxu0 %v1202
    %1281 = vmatprep.subr.bf16.mxu0 0
    %1282 = vmatpush1.bf16.msra.mxu0 %v1203
    %1283 = vmatprep.subr.bf16.mxu0 0
    %1284 = vmatpush1.bf16.msra.mxu0 %v1204
    %1285 = vmatprep.mubr.bf16.mxu0 %v987
    %1286 = vmatmul.mubr.bf16.gmra.mrb[0].mxu0 %v986
    %v1287 = vpop.f32.mrb[0].mxu0
    %v1288 = vadd.f32 %v1059, %v1287
    %v1289 = vpop.f32.mrb[0].mxu0
    %v1290 = vpop.f32.mrb[0].mxu0
    %v1291 = vpop.f32.mrb[0].mxu0
    %1292 = vdwg.mxu0
    %1293 = vmatprep.subr.bf16.mxu0 0
    %1294 = vmatpush1.bf16.msra.mxu0 %v1205
    %1295 = vmatprep.subr.bf16.mxu0 0
    %1296 = vmatpush1.bf16.msra.mxu0 %v1206
    %1297 = vmatprep.subr.bf16.mxu0 0
    %1298 = vmatpush1.bf16.msra.mxu0 %v1207
    %1299 = vmatprep.subr.bf16.mxu0 0
    %1300 = vmatpush1.bf16.msra.mxu0 %v1208
    %1301 = vmatprep.subr.bf16.mxu0 0
    %1302 = vmatpush1.bf16.msra.mxu0 %v1209
    %1303 = vmatprep.subr.bf16.mxu0 0
    %1304 = vmatpush1.bf16.msra.mxu0 %v1210
    %1305 = vmatprep.subr.bf16.mxu0 0
    %1306 = vmatpush1.bf16.msra.mxu0 %v1211
    %1307 = vmatprep.subr.bf16.mxu0 0
    %1308 = vmatpush1.bf16.msra.mxu0 %v1212
    %1309 = vmatprep.subr.bf16.mxu0 0
    %1310 = vmatpush1.bf16.msra.mxu0 %v1213
    %1311 = vmatprep.subr.bf16.mxu0 0
    %1312 = vmatpush1.bf16.msra.mxu0 %v1214
    %1313 = vmatprep.subr.bf16.mxu0 0
    %1314 = vmatpush1.bf16.msra.mxu0 %v1215
    %1315 = vmatprep.subr.bf16.mxu0 0
    %1316 = vmatpush1.bf16.msra.mxu0 %v1216
    %1317 = vmatprep.subr.bf16.mxu0 0
    %1318 = vmatpush1.bf16.msra.mxu0 %v1217
    %1319 = vmatprep.subr.bf16.mxu0 0
    %1320 = vmatpush1.bf16.msra.mxu0 %v1218
    %1321 = vmatprep.subr.bf16.mxu0 0
    %1322 = vmatpush1.bf16.msra.mxu0 %v1219
    %1323 = vmatprep.subr.bf16.mxu0 0
    %1324 = vmatpush1.bf16.msra.mxu0 %v1220
    %1325 = vmatprep.mubr.bf16.mxu0 %v989
    %1326 = vmatmul.mubr.bf16.gmra.mrb[0].mxu0 %v988
    %v1327 = vpop.f32.mrb[0].mxu0
    %v1328 = vadd.f32 %v1288, %v1327
    %v1329 = vpop.f32.mrb[0].mxu0
    %v1330 = vpop.f32.mrb[0].mxu0
    %v1331 = vpop.f32.mrb[0].mxu0
    %1332 = vdwg.mxu0
    %v1333 = vpack.c.bf16 %v1328, %v1328
    %1334 = vst [vmem:[%s5] sm:$0xf] %v1333
    // Predicated region
    $region34: #{feedforward.1} parent=1 // pred_check
      _
    $region35: #{feedforward.1} parent=1 // pred_check_branch
      %1336 = sbr.rel (0) target = $region37
    $region36: #{feedforward.1} parent=1 // pred_region
      _
    $region37: #{feedforward.1} parent=1 // pred_fallthru
      _
    // Predicated region
    $region38: #{feedforward.1} parent=1 // pred_check
      _
    $region39: #{feedforward.1} parent=1 // pred_check_branch
      %1338 = sbr.rel (0) target = $region41
    $region40: #{feedforward.1} parent=1 // pred_region
      _
    $region41: #{feedforward.1} parent=1 // pred_fallthru
      _
    %1339 = vsyncpa [#allocation3], 1
    %1340 = vsyncpa [#allocation5], 1

</llo_original>
